<compile_context>
chip_gen: v5e
topology: v5e:2x2
jax: 0.10.0
libtpu: 0.0.40
codegen_flags: <defaults>
</compile_context>

<pallas_src>
import jax
import jax.numpy as jnp
from jax.experimental import pallas as pl
from jax.experimental.pallas import tpu as pltpu


def _round_up(x: int, m: int) -> int:
    return ((x + m - 1) // m) * m


def _cdiv(a: int, b: int) -> int:
    return -(-a // b)


# --------------------------------------------------------------------------
# Kernels
# --------------------------------------------------------------------------

def _cv_linear_kernel_direct(xr_ref, xi_ref, wr_ref, wi_ref, or_ref, oi_ref):
    """f32-output variant: accumulate straight into the resident output blocks."""
    k = pl.program_id(2)

    @pl.when(k == 0)
    def _():
        or_ref[...] = jnp.zeros_like(or_ref)
        oi_ref[...] = jnp.zeros_like(oi_ref)

    xr = xr_ref[...]
    xi = xi_ref[...]
    wr = wr_ref[...]
    wi = wi_ref[...]

    # Gauss' trick: 3 matmuls. Consume each product immediately so only one
    # tm x tn f32 temporary is live at any time.
    t1 = jnp.dot(xr, wr, preferred_element_type=jnp.float32)
    or_ref[...] += t1
    oi_ref[...] -= t1
    t2 = jnp.dot(xi, wi, preferred_element_type=jnp.float32)
    or_ref[...] -= t2
    oi_ref[...] -= t2
    t3 = jnp.dot(xr + xi, wr + wi, preferred_element_type=jnp.float32)
    oi_ref[...] += t3


def _cv_linear_kernel_scratch(xr_ref, xi_ref, wr_ref, wi_ref, or_ref, oi_ref,
                              acc_r_ref, acc_i_ref):
    """Generic variant (non-f32 outputs): f32 scratch accumulators, cast at end."""
    k = pl.program_id(2)

    @pl.when(k == 0)
    def _():
        acc_r_ref[...] = jnp.zeros_like(acc_r_ref)
        acc_i_ref[...] = jnp.zeros_like(acc_i_ref)

    xr = xr_ref[...]
    xi = xi_ref[...]
    wr = wr_ref[...]
    wi = wi_ref[...]

    t1 = jnp.dot(xr, wr, preferred_element_type=jnp.float32)
    acc_r_ref[...] += t1
    acc_i_ref[...] -= t1
    t2 = jnp.dot(xi, wi, preferred_element_type=jnp.float32)
    acc_r_ref[...] -= t2
    acc_i_ref[...] -= t2
    t3 = jnp.dot(xr + xi, wr + wi, preferred_element_type=jnp.float32)
    acc_i_ref[...] += t3

    @pl.when(k == pl.num_programs(2) - 1)
    def _():
        or_ref[...] = acc_r_ref[...].astype(or_ref.dtype)
        oi_ref[...] = acc_i_ref[...].astype(oi_ref.dtype)


# --------------------------------------------------------------------------
# Wrapper
# --------------------------------------------------------------------------

# (tm, tn, tk, vmem_limit_bytes), sized for bf16 operands + f32 accumulation.
_GEN_CONFIG = {
    "v5e":     (512,  512,  512,  96 << 20),   # 128 MiB VMEM, 16 MiB scoped default
    "v6e":     (1024, 1024, 512,  96 << 20),   # 128 MiB VMEM, ~640 flop/B roofline
    "v7x":     (512,  1024, 512,  48 << 20),   # only 64 MiB VMEM per TensorCore
    "unknown": (512,  1024, 512,  48 << 20),
}


def _tpu_generation() -> str:
    try:
        kind = jax.devices()[0].device_kind.lower()
    except Exception:
        return "unknown"
    if "v5 lite" in kind or "v5lite" in kind or "v5e" in kind:
        return "v5e"
    if "v6" in kind:
        return "v6e"
    if "v7" in kind:
        return "v7x"
    return "unknown"


def lazy_cv_linear(x_real, x_imag, w_r, w_i, b_r=None, b_i=None, *,
                   compute_dtype=jnp.bfloat16, tm=None, tn=None, tk=None):
    """Complex-valued linear layer (LazyCVLinear forward).

    x_real, x_imag : (..., K)  real / imaginary parts of the input
    w_r, w_i       : (N, K)    real / imaginary weights (PyTorch convention)
    b_r, b_i       : (N,)      optional biases (module default: bias=False)
    compute_dtype  : dtype for the matmul operands (default bf16; pass
                     jnp.float32 for full precision). Accumulation is f32.
    Returns (out_real, out_imag) with shape (..., N), dtype of x_real.
    """
    orig_shape = x_real.shape
    K = orig_shape[-1]
    N = w_r.shape[0]
    out_dtype = x_real.dtype

    if (b_r is None) != (b_i is None):
        raise ValueError("Provide both b_r and b_i, or neither.")

    xr = x_real.reshape(-1, K)
    xi = x_imag.reshape(-1, K)
    M = xr.shape[0]

    gen = _tpu_generation()
    tm_cfg, tn_cfg, tk_cfg, vmem_limit = _GEN_CONFIG[gen]
    tm = tm_cfg if tm is None else tm
    tn = tn_cfg if tn is None else tn
    tk = tk_cfg if tk is None else tk

    if compute_dtype is None:
        compute_dtype = out_dtype
    compute_dtype = jnp.dtype(compute_dtype)

    # Weight prep: transpose once, cast to compute dtype. The Gauss-sum weight
    # (W_r + W_i)^T is NOT materialized -- it is recomputed per block in-kernel.
    wrT = jnp.asarray(w_r).T.astype(compute_dtype)
    wiT = jnp.asarray(w_i).T.astype(compute_dtype)
    xr = xr.astype(compute_dtype)
    xi = xi.astype(compute_dtype)

    # Row alignment: 8 (f32), 16 (bf16), 32 (int8/fp8) -- sublane packing.
    row_align = max(8, 32 // compute_dtype.itemsize)

    # Tile selection. M and N are never padded (edge blocks are clipped).
    tm_eff = min(tm, _round_up(M, row_align))
    tn_eff = N if N <= tn else tn            # tn is a multiple of 128 by config

    # K tiling: full K when it fits; otherwise prefer a tk that divides K
    # exactly (128-multiple) so the activations never need an extra HBM pass.
    if K <= tk:
        tk_eff, K_pad = K, K
    else:
        tk_eff = 0
        for d in range(tk, 127, -128):
            if K % d == 0:
                tk_eff, K_pad = d, K
                break
        if tk_eff == 0:
            tk_eff = tk
            K_pad = _round_up(K, tk)

    gm = _cdiv(M, tm_eff)
    gn = _cdiv(N, tn_eff)
    # v7x has 2 TensorCores: make sure the parallel grid has >= 2 iterations.
    if gen == "v7x" and gm * gn == 1:
        if N >= 256:
            tn_eff = _round_up(_cdiv(N, 2), 128)
        elif M >= 2 * row_align:
            tm_eff = _round_up(_cdiv(M, 2), row_align)
        gm = _cdiv(M, tm_eff)
        gn = _cdiv(N, tn_eff)
    gk = K_pad // tk_eff

    # Zero-pad K only when unavoidable (garbage in the K tail would corrupt
    # valid outputs, unlike the clipped M / N tails).
    if K_pad != K:
        xr = jnp.pad(xr, ((0, 0), (0, K_pad - K)))
        xi = jnp.pad(xi, ((0, 0), (0, K_pad - K)))
        wrT = jnp.pad(wrT, ((0, K_pad - K), (0, 0)))
        wiT = jnp.pad(wiT, ((0, K_pad - K), (0, 0)))

    direct = jnp.dtype(out_dtype) == jnp.float32
    if direct:
        kernel = _cv_linear_kernel_direct
        scratch = []
    else:
        kernel = _cv_linear_kernel_scratch
        scratch = [pltpu.VMEM((tm_eff, tn_eff), jnp.float32),
                   pltpu.VMEM((tm_eff, tn_eff), jnp.float32)]

    cbytes = compute_dtype.itemsize
    obytes = jnp.dtype(out_dtype).itemsize
    cost = pl.CostEstimate(
        flops=2 * 3 * M * K_pad * N,
        transcendentals=0,
        bytes_accessed=(2 * M * K_pad + 2 * K_pad * N) * cbytes
        + 2 * M * N * obytes,
    )

    out_r, out_i = pl.pallas_call(
        kernel,
        out_shape=(
            jax.ShapeDtypeStruct((M, N), out_dtype),
            jax.ShapeDtypeStruct((M, N), out_dtype),
        ),
        grid_spec=pltpu.PrefetchScalarGridSpec(
            num_scalar_prefetch=0,
            grid=(gm, gn, gk),
            in_specs=[
                pl.BlockSpec((tm_eff, tk_eff), lambda i, j, k: (i, k)),  # x_real
                pl.BlockSpec((tm_eff, tk_eff), lambda i, j, k: (i, k)),  # x_imag
                pl.BlockSpec((tk_eff, tn_eff), lambda i, j, k: (k, j)),  # W_r^T
                pl.BlockSpec((tk_eff, tn_eff), lambda i, j, k: (k, j)),  # W_i^T
            ],
            out_specs=[
                pl.BlockSpec((tm_eff, tn_eff), lambda i, j, k: (i, j)),
                pl.BlockSpec((tm_eff, tn_eff), lambda i, j, k: (i, j)),
            ],
            scratch_shapes=scratch,
        ),
        compiler_params=pltpu.CompilerParams(
            dimension_semantics=("parallel", "parallel", "arbitrary"),
            vmem_limit_bytes=vmem_limit,
        ),
        cost_estimate=cost,
    )(xr, xi, wrT, wiT)

    if b_r is not None:
        # Gauss' trick: real bias = b_r - b_i; imaginary bias cancels exactly.
        out_r = out_r + (jnp.asarray(b_r) - jnp.asarray(b_i)).astype(out_dtype)

    new_shape = orig_shape[:-1] + (N,)
    return out_r.reshape(new_shape), out_i.reshape(new_shape)


if __name__ == "__main__":
    key = jax.random.PRNGKey(0)
    k1, k2, k3, k4 = jax.random.split(key, 4)

    B, S, K, N = 2, 8, 32, 64  # batch, seq, in_features (lazily inferred), out_features

    x_real = jax.random.normal(k1, (B, S, K), jnp.float32)
    x_imag = jax.random.normal(k2, (B, S, K), jnp.float32)
    # Deterministic synthetic weights (LazyLinear layout: (out_features, in_features)).
    w_r = jax.random.normal(k3, (N, K), jnp.float32) * 0.05
    w_i = jax.random.normal(k4, (N, K), jnp.float32) * 0.05

    # Pure-JAX reference (Gauss' trick, matching the PyTorch forward, bias=False).
    t1 = x_real @ w_r.T
    t2 = x_imag @ w_i.T
    t3 = (x_real + x_imag) @ (w_r + w_i).T
    ref_r = t1 - t2
    ref_i = t3 - t2 - t1

    # Default fast path: bf16 operands on the MXU, f32 accumulation.
    out_r, out_i = lazy_cv_linear(x_real, x_imag, w_r, w_i)
    jax.block_until_ready((out_r, out_i))
    assert out_r.shape == (B, S, N) and out_i.shape == (B, S, N)
    assert jnp.allclose(out_r, ref_r, atol=5e-2, rtol=5e-2)
    assert jnp.allclose(out_i, ref_i, atol=5e-2, rtol=5e-2)

    # Full-precision path for a tight numerical check.
    out_r32, out_i32 = lazy_cv_linear(x_real, x_imag, w_r, w_i,
                                      compute_dtype=jnp.float32)
    jax.block_until_ready((out_r32, out_i32))
    assert jnp.allclose(out_r32, ref_r, atol=1e-4, rtol=1e-4)
    assert jnp.allclose(out_i32, ref_i, atol=1e-4, rtol=1e-4)

    print("KERNEL_OK")
</pallas_src>

<mosaic_0001>
module attributes {stable_mosaic.version = 11 : i64} {
  func.func @_cv_linear_kernel_direct(%arg0: i32, %arg1: i32, %arg2: i32, %arg3: memref<16x32xbf16, #tpu.memory_space<vmem>>, %arg4: memref<16x32xbf16, #tpu.memory_space<vmem>>, %arg5: memref<32x64xbf16, #tpu.memory_space<vmem>>, %arg6: memref<32x64xbf16, #tpu.memory_space<vmem>>, %arg7: memref<16x64xf32, #tpu.memory_space<vmem>>, %arg8: memref<16x64xf32, #tpu.memory_space<vmem>>) attributes {dimension_semantics = [#tpu.dimension_semantics<parallel>, #tpu.dimension_semantics<parallel>, #tpu.dimension_semantics<arbitrary>], iteration_bounds = array<i64: 1, 1, 1>, scalar_prefetch = 0 : i64, scratch_operands = 0 : i64, tpu.core_type = #tpu.core_type<tc>, window_params = [{transform_indices = @transform_0, window_bounds = array<i64: 16, 32>}, {transform_indices = @transform_1, window_bounds = array<i64: 16, 32>}, {transform_indices = @transform_2, window_bounds = array<i64: 32, 64>}, {transform_indices = @transform_3, window_bounds = array<i64: 32, 64>}, {transform_indices = @transform_4, window_bounds = array<i64: 16, 64>}, {transform_indices = @transform_5, window_bounds = array<i64: 16, 64>}]} {
    %c0_i32 = arith.constant 0 : i32
    %0 = arith.cmpi eq, %arg2, %c0_i32 : i32
    %1 = arith.extui %0 : i1 to i32
    %c0_i32_0 = arith.constant 0 : i32
    %2 = arith.cmpi ne, %1, %c0_i32_0 : i32
    scf.if %2 {
      %cst_30 = arith.constant 0.000000e+00 : f32
      %27 = vector.broadcast %cst_30 : f32 to vector<16x64xf32>
      %c0_31 = arith.constant 0 : index
      %c0_32 = arith.constant 0 : index
      %28 = vector.load %arg7[%c0_31, %c0_32] : memref<16x64xf32, #tpu.memory_space<vmem>>, vector<16x64xf32>
      tpu.vector_store %arg7[%c0_31, %c0_32], %27 {strides = array<i32>} : memref<16x64xf32, #tpu.memory_space<vmem>>, vector<16x64xf32>,
      %cst_33 = arith.constant 0.000000e+00 : f32
      %29 = vector.broadcast %cst_33 : f32 to vector<16x64xf32>
      %c0_34 = arith.constant 0 : index
      %c0_35 = arith.constant 0 : index
      %30 = vector.load %arg8[%c0_34, %c0_35] : memref<16x64xf32, #tpu.memory_space<vmem>>, vector<16x64xf32>
      tpu.vector_store %arg8[%c0_34, %c0_35], %29 {strides = array<i32>} : memref<16x64xf32, #tpu.memory_space<vmem>>, vector<16x64xf32>,
    } else {
    }
    %c0 = arith.constant 0 : index
    %c0_1 = arith.constant 0 : index
    %3 = vector.load %arg3[%c0, %c0_1] : memref<16x32xbf16, #tpu.memory_space<vmem>>, vector<16x32xbf16>
    %c0_2 = arith.constant 0 : index
    %c0_3 = arith.constant 0 : index
    %4 = vector.load %arg4[%c0_2, %c0_3] : memref<16x32xbf16, #tpu.memory_space<vmem>>, vector<16x32xbf16>
    %c0_4 = arith.constant 0 : index
    %c0_5 = arith.constant 0 : index
    %5 = vector.load %arg5[%c0_4, %c0_5] : memref<32x64xbf16, #tpu.memory_space<vmem>>, vector<32x64xbf16>
    %c0_6 = arith.constant 0 : index
    %c0_7 = arith.constant 0 : index
    %6 = vector.load %arg6[%c0_6, %c0_7] : memref<32x64xbf16, #tpu.memory_space<vmem>>, vector<32x64xbf16>
    %cst = arith.constant dense<0.000000e+00> : vector<16x64xf32>
    %7 = tpu.matmul %3, %5, %cst {dimension_numbers = #tpu.dot_dimension_numbers<[1], [0], [0], [1], [0, 0, 1, 1], [], []>} : vector<16x32xbf16>, vector<32x64xbf16>, vector<16x64xf32> -> vector<16x64xf32>
    %c0_8 = arith.constant 0 : index
    %c0_9 = arith.constant 0 : index
    %8 = vector.load %arg7[%c0_8, %c0_9] : memref<16x64xf32, #tpu.memory_space<vmem>>, vector<16x64xf32>
    %9 = arith.addf %8, %7 : vector<16x64xf32>
    %c0_10 = arith.constant 0 : index
    %c0_11 = arith.constant 0 : index
    %10 = vector.load %arg7[%c0_10, %c0_11] : memref<16x64xf32, #tpu.memory_space<vmem>>, vector<16x64xf32>
    tpu.vector_store %arg7[%c0_10, %c0_11], %9 {strides = array<i32>} : memref<16x64xf32, #tpu.memory_space<vmem>>, vector<16x64xf32>,
    %c0_12 = arith.constant 0 : index
    %c0_13 = arith.constant 0 : index
    %11 = vector.load %arg8[%c0_12, %c0_13] : memref<16x64xf32, #tpu.memory_space<vmem>>, vector<16x64xf32>
    %12 = arith.subf %11, %7 : vector<16x64xf32>
    %c0_14 = arith.constant 0 : index
    %c0_15 = arith.constant 0 : index
    %13 = vector.load %arg8[%c0_14, %c0_15] : memref<16x64xf32, #tpu.memory_space<vmem>>, vector<16x64xf32>
    tpu.vector_store %arg8[%c0_14, %c0_15], %12 {strides = array<i32>} : memref<16x64xf32, #tpu.memory_space<vmem>>, vector<16x64xf32>,
    %cst_16 = arith.constant dense<0.000000e+00> : vector<16x64xf32>
    %14 = tpu.matmul %4, %6, %cst_16 {dimension_numbers = #tpu.dot_dimension_numbers<[1], [0], [0], [1], [0, 0, 1, 1], [], []>} : vector<16x32xbf16>, vector<32x64xbf16>, vector<16x64xf32> -> vector<16x64xf32>
    %c0_17 = arith.constant 0 : index
    %c0_18 = arith.constant 0 : index
    %15 = vector.load %arg7[%c0_17, %c0_18] : memref<16x64xf32, #tpu.memory_space<vmem>>, vector<16x64xf32>
    %16 = arith.subf %15, %14 : vector<16x64xf32>
    %c0_19 = arith.constant 0 : index
    %c0_20 = arith.constant 0 : index
    %17 = vector.load %arg7[%c0_19, %c0_20] : memref<16x64xf32, #tpu.memory_space<vmem>>, vector<16x64xf32>
    tpu.vector_store %arg7[%c0_19, %c0_20], %16 {strides = array<i32>} : memref<16x64xf32, #tpu.memory_space<vmem>>, vector<16x64xf32>,
    %c0_21 = arith.constant 0 : index
    %c0_22 = arith.constant 0 : index
    %18 = vector.load %arg8[%c0_21, %c0_22] : memref<16x64xf32, #tpu.memory_space<vmem>>, vector<16x64xf32>
    %19 = arith.subf %18, %14 : vector<16x64xf32>
    %c0_23 = arith.constant 0 : index
    %c0_24 = arith.constant 0 : index
    %20 = vector.load %arg8[%c0_23, %c0_24] : memref<16x64xf32, #tpu.memory_space<vmem>>, vector<16x64xf32>
    tpu.vector_store %arg8[%c0_23, %c0_24], %19 {strides = array<i32>} : memref<16x64xf32, #tpu.memory_space<vmem>>, vector<16x64xf32>,
    %21 = arith.addf %3, %4 : vector<16x32xbf16>
    %22 = arith.addf %5, %6 : vector<32x64xbf16>
    %cst_25 = arith.constant dense<0.000000e+00> : vector<16x64xf32>
    %23 = tpu.matmul %21, %22, %cst_25 {dimension_numbers = #tpu.dot_dimension_numbers<[1], [0], [0], [1], [0, 0, 1, 1], [], []>} : vector<16x32xbf16>, vector<32x64xbf16>, vector<16x64xf32> -> vector<16x64xf32>
    %c0_26 = arith.constant 0 : index
    %c0_27 = arith.constant 0 : index
    %24 = vector.load %arg8[%c0_26, %c0_27] : memref<16x64xf32, #tpu.memory_space<vmem>>, vector<16x64xf32>
    %25 = arith.addf %24, %23 : vector<16x64xf32>
    %c0_28 = arith.constant 0 : index
    %c0_29 = arith.constant 0 : index
    %26 = vector.load %arg8[%c0_28, %c0_29] : memref<16x64xf32, #tpu.memory_space<vmem>>, vector<16x64xf32>
    tpu.vector_store %arg8[%c0_28, %c0_29], %25 {strides = array<i32>} : memref<16x64xf32, #tpu.memory_space<vmem>>, vector<16x64xf32>,
    return
  }
  func.func @transform_0(%arg0: i32, %arg1: i32, %arg2: i32) -> (i32, i32) {
    %c0_i32 = arith.constant 0 : i32
    return %arg0, %arg2 : i32, i32
  }
  func.func @transform_1(%arg0: i32, %arg1: i32, %arg2: i32) -> (i32, i32) {
    %c0_i32 = arith.constant 0 : i32
    return %arg0, %arg2 : i32, i32
  }
  func.func @transform_2(%arg0: i32, %arg1: i32, %arg2: i32) -> (i32, i32) {
    %c0_i32 = arith.constant 0 : i32
    return %arg2, %arg1 : i32, i32
  }
  func.func @transform_3(%arg0: i32, %arg1: i32, %arg2: i32) -> (i32, i32) {
    %c0_i32 = arith.constant 0 : i32
    return %arg2, %arg1 : i32, i32
  }
  func.func @transform_4(%arg0: i32, %arg1: i32, %arg2: i32) -> (i32, i32) {
    %c0_i32 = arith.constant 0 : i32
    return %arg0, %arg1 : i32, i32
  }
  func.func @transform_5(%arg0: i32, %arg1: i32, %arg2: i32) -> (i32, i32) {
    %c0_i32 = arith.constant 0 : i32
    return %arg0, %arg1 : i32, i32
  }
}

</mosaic_0001>

<llo_original>
// kernel: tpu_custom_call.1
$region0: #{tpu_custom_call.1}
  #allocation0 [shape = 'u32[]', space=smem, size = 0x4, offset = 0x4, fixed_abs, tag = 'smem constant byte address 0x4 - core index']
  #allocation1 [shape = 'u32[72,128]{1,0:T(1,128)}', space=vmem, size = 0x9000, scoped, tag = 'internal scratch']
  %s0 = inlined_call_operand.hbm [shape: bf16[16,32], index: 0, kind: input, shape index: {}]
  %s1 = inlined_call_operand.hbm [shape: bf16[16,32], index: 1, kind: input, shape index: {}]
  %s2 = inlined_call_operand.hbm [shape: bf16[32,64], index: 2, kind: input, shape index: {}]
  %s3 = inlined_call_operand.hbm [shape: bf16[32,64], index: 3, kind: input, shape index: {}]
  %s4 = inlined_call_operand.hbm [shape: f32[16,64], index: 4, kind: output, shape index: {0}]
  %s5 = inlined_call_operand.hbm [shape: f32[16,64], index: 5, kind: output, shape index: {1}]
  %6 = xla_tuple %s4, %s5
  %s7 = sld [smem:[#allocation0]]
  $region54: #{tpu_custom_call.1} parent=0
    _
  %s9 = ssub.s32 1, %s7
  %s10 = scalar_select 0, %s9, %s7
  $region1: #{tpu_custom_call.1} parent=0
    #allocation2 [shape = 'u8[4096]{0}', space=vmem, size = 0x1000, scoped, tag = 'input window, operand 0, single buffered']
    #allocation3 [shape = 's32[1]{0}', space=sflag, size = 0x4, scoped, tag = 'scoped memory for tpu_custom_call.1']
    #allocation4 [shape = 's32[1]{0}', space=sflag, size = 0x4, scoped, tag = 'scoped memory for tpu_custom_call.1']
    #allocation5 [shape = 'u8[4096]{0}', space=vmem, size = 0x1000, scoped, tag = 'input window, operand 1, single buffered']
    #allocation6 [shape = 's32[1]{0}', space=sflag, size = 0x4, scoped, tag = 'scoped memory for tpu_custom_call.1']
    #allocation7 [shape = 'u8[8192]{0}', space=vmem, size = 0x2000, scoped, tag = 'input window, operand 2, single buffered']
    #allocation8 [shape = 'u8[8192]{0}', space=vmem, size = 0x2000, scoped, tag = 'input window, operand 3, single buffered']
    #allocation9 [shape = 's32[1]{0}', space=sflag, size = 0x4, scoped, tag = 'scoped memory for tpu_custom_call.1']
    #allocation10 [shape = 'u8[8192]{0}', space=vmem, size = 0x2000, scoped, tag = 'output window, operand 0, single buffered']
    #allocation11 [shape = 'u8[8192]{0}', space=vmem, size = 0x2000, scoped, tag = 'output window, operand 1, single buffered']
    #allocation12 [shape = 's32[1]{0}', space=sflag, size = 0x4, scoped, tag = 'scoped memory for tpu_custom_call.1']
    %11 = vsyncpa [#allocation3], 0
    %12 = vsyncpa [#allocation6], 0
    %13 = vsyncpa [#allocation9], 0
    %14 = vsyncpa [#allocation4], 0
    %15 = vsyncpa [#allocation12], 0
    // Predicated region
    $region2: #{tpu_custom_call.1} parent=1 // pred_check
      _
    $region3: #{tpu_custom_call.1} parent=1 // pred_check_branch
      %17 = sbr.rel (0) target = $region5
    $region4: #{tpu_custom_call.1} parent=1 // pred_region
      %19 = vsyncadd [#allocation3], 0
      %s20 = sshll.u32 %s0, 4
      %s21 = int_to_ptr.hbm [resolvable:$true] %s20
      %s22 = sshll.u32 [#allocation2], 4
      %s23 = int_to_ptr.vmem [resolvable:$true] %s22
      %28 = dma.hbm_to_vmem [thread:$0]  %s21, 128, %s23, [#allocation3], 64, 64, 4
    $region5: #{tpu_custom_call.1} parent=1 // pred_fallthru
      _
    // Predicated region
    $region6: #{tpu_custom_call.1} parent=1 // pred_check
      _
    $region7: #{tpu_custom_call.1} parent=1 // pred_check_branch
      %30 = sbr.rel (0) target = $region9
    $region8: #{tpu_custom_call.1} parent=1 // pred_region
      %32 = vsyncadd [#allocation6], 0
      %s33 = sshll.u32 %s1, 4
      %s34 = int_to_ptr.hbm [resolvable:$true] %s33
      %s35 = sshll.u32 [#allocation5], 4
      %s36 = int_to_ptr.vmem [resolvable:$true] %s35
      %41 = dma.hbm_to_vmem [thread:$0]  %s34, 128, %s36, [#allocation6], 64, 64, 4
    $region9: #{tpu_custom_call.1} parent=1 // pred_fallthru
      _
    // Predicated region
    $region10: #{tpu_custom_call.1} parent=1 // pred_check
      _
    $region11: #{tpu_custom_call.1} parent=1 // pred_check_branch
      %43 = sbr.rel (0) target = $region13
    $region12: #{tpu_custom_call.1} parent=1 // pred_region
      %45 = vsyncadd [#allocation6], 0
      %s46 = sshll.u32 %s2, 4
      %s47 = int_to_ptr.hbm [resolvable:$true] %s46
      %s48 = sshll.u32 [#allocation7], 4
      %s49 = int_to_ptr.vmem [resolvable:$true] %s48
      %54 = dma.hbm_to_vmem [thread:$0]  %s47, 256, %s49, [#allocation6], 64, 64, 4
    $region13: #{tpu_custom_call.1} parent=1 // pred_fallthru
      _
    // Predicated region
    $region14: #{tpu_custom_call.1} parent=1 // pred_check
      _
    $region15: #{tpu_custom_call.1} parent=1 // pred_check_branch
      %56 = sbr.rel (0) target = $region17
    $region16: #{tpu_custom_call.1} parent=1 // pred_region
      %58 = vsyncadd [#allocation9], 0
      %s59 = sshll.u32 %s3, 4
      %s60 = int_to_ptr.hbm [resolvable:$true] %s59
      %s61 = sshll.u32 [#allocation8], 4
      %s62 = int_to_ptr.vmem [resolvable:$true] %s61
      %67 = dma.hbm_to_vmem [thread:$0]  %s60, 256, %s62, [#allocation9], 64, 64, 4
    $region17: #{tpu_custom_call.1} parent=1 // pred_fallthru
      _
    // Predicated region
    $region18: #{tpu_custom_call.1} parent=1 // pred_check
      _
    $region19: #{tpu_custom_call.1} parent=1 // pred_check_branch
      %69 = sbr.rel (0) target = $region21
    $region20: #{tpu_custom_call.1} parent=1 // pred_region
      %71 = dma.done [#allocation3], 128
    $region21: #{tpu_custom_call.1} parent=1 // pred_fallthru
      _
    // Predicated region
    $region22: #{tpu_custom_call.1} parent=1 // pred_check
      _
    $region23: #{tpu_custom_call.1} parent=1 // pred_check_branch
      %73 = sbr.rel (0) target = $region25
    $region24: #{tpu_custom_call.1} parent=1 // pred_region
      %75 = dma.done [#allocation6], 128
    $region25: #{tpu_custom_call.1} parent=1 // pred_fallthru
      _
    // Predicated region
    $region26: #{tpu_custom_call.1} parent=1 // pred_check
      _
    $region27: #{tpu_custom_call.1} parent=1 // pred_check_branch
      %77 = sbr.rel (0) target = $region29
    $region28: #{tpu_custom_call.1} parent=1 // pred_region
      %79 = dma.done [#allocation6], 256
    $region29: #{tpu_custom_call.1} parent=1 // pred_fallthru
      _
    // Predicated region
    $region30: #{tpu_custom_call.1} parent=1 // pred_check
      _
    $region31: #{tpu_custom_call.1} parent=1 // pred_check_branch
      %81 = sbr.rel (0) target = $region33
    $region32: #{tpu_custom_call.1} parent=1 // pred_region
      %83 = dma.done [#allocation9], 256
    $region33: #{tpu_custom_call.1} parent=1 // pred_fallthru
      _
    %p85 = scmp.eq.s32.totalorder 0, 0
    // Predicated region
    $region34: #{tpu_custom_call.1} parent=1 // pred_check
      %p86 = pneg %p85
    $region35: #{tpu_custom_call.1} parent=1 // pred_check_branch
      %88 = sbr.rel (%p86) target = $region37
    $region36: #{tpu_custom_call.1} parent=1 // pred_region
      %vm89 = vcmask 523264
      %90 = vst.msk [vmem:[#allocation10] sm:$0xff] %vm89, 0.0
      %91 = vst.msk [vmem:[#allocation10 + $0x8] sm:$0xff] %vm89, 0.0
      %92 = vst.msk [vmem:[#allocation11] sm:$0xff] %vm89, 0.0
      %93 = vst.msk [vmem:[#allocation11 + $0x8] sm:$0xff] %vm89, 0.0
    $region37: #{tpu_custom_call.1} parent=1 // pred_fallthru
      _
    %v94 = vld [vmem:[#allocation2] sm:$0xf]
    %v95 = vld [vmem:[#allocation2 + $0x4] sm:$0xf]
    %v96 = vld [vmem:[#allocation5] sm:$0xf]
    %v97 = vld [vmem:[#allocation5 + $0x4] sm:$0xf]
    %v98 = vld [vmem:[#allocation7] sm:$0xf]
    %v99 = vld [vmem:[#allocation7 + $0x4] sm:$0xf]
    %v100 = vld [vmem:[#allocation7 + $0x8] sm:$0xf]
    %v101 = vld [vmem:[#allocation7 + $0xc] sm:$0xf]
    %v102 = vld [vmem:[#allocation8] sm:$0xf]
    %v103 = vld [vmem:[#allocation8 + $0x4] sm:$0xf]
    %v104 = vld [vmem:[#allocation8 + $0x8] sm:$0xf]
    %v105 = vld [vmem:[#allocation8 + $0xc] sm:$0xf]
    %v108 = vunpack.c.l.b16 %v94
    %v109 = vunpack.c.l.b16 %v95
    %v110 = vpack.c.b16 %v109, %v108
    %v115 = vunpack.c.l.b16 %v98
    %v116 = vunpack.c.l.b16 %v99
    %v117 = vunpack.c.l.b16 %v100
    %v118 = vunpack.c.l.b16 %v101
    %v119 = vpack.c.b16 %v116, %v115
    %v120 = vpack.c.b16 %v118, %v117
    %vm123 = vcmask 261120
    %v125 = vsel %vm123, %v110, 0
    %127 = vmatpush.bf16.msra.mxu0 0
    %128 = vmatpush.bf16.msra.mxu0 0
    %129 = vmatpush.bf16.msra.mxu0 0
    %130 = vmatpush.bf16.msra.mxu0 0
    %131 = vmatpush.bf16.msra.mxu0 0
    %132 = vmatpush.bf16.msra.mxu0 0
    %133 = vmatpush.bf16.msra.mxu0 %v120
    %134 = vmatpush.bf16.msra.mxu0 %v119
    %135 = vmatmul.bf16.gmra.mxu0 %v125
    %v136 = vpop.f32.mrf.mxu0
    %v137 = vadd.f32 0.0, %v136
    %v138 = vpop.f32.mrf.mxu0
    %v139 = vadd.f32 0.0, %v138
    %140 = vdwg.mxu0
    %v141 = vld [vmem:[#allocation10] sm:$0xff]
    %v142 = vld [vmem:[#allocation10 + $0x8] sm:$0xff]
    %v143 = vadd.f32 %v141, %v137
    %v144 = vadd.f32 %v142, %v139
    %vm145 = vcmask 523264
    %146 = vst.msk [vmem:[#allocation10] sm:$0xff] %vm145, %v143
    %147 = vst.msk [vmem:[#allocation10 + $0x8] sm:$0xff] %vm145, %v144
    %v148 = vld [vmem:[#allocation11] sm:$0xff]
    %v149 = vld [vmem:[#allocation11 + $0x8] sm:$0xff]
    %v150 = vsub.f32 %v148, %v137
    %v151 = vsub.f32 %v149, %v139
    %152 = vst.msk [vmem:[#allocation11] sm:$0xff] %vm145, %v150
    %153 = vst.msk [vmem:[#allocation11 + $0x8] sm:$0xff] %vm145, %v151
    %v156 = vunpack.c.l.b16 %v96
    %v157 = vunpack.c.l.b16 %v97
    %v158 = vpack.c.b16 %v157, %v156
    %v163 = vunpack.c.l.b16 %v102
    %v164 = vunpack.c.l.b16 %v103
    %v165 = vunpack.c.l.b16 %v104
    %v166 = vunpack.c.l.b16 %v105
    %v167 = vpack.c.b16 %v164, %v163
    %v168 = vpack.c.b16 %v166, %v165
    %v172 = vsel %vm123, %v158, 0
    %174 = vmatpush.bf16.msra.mxu0 0
    %175 = vmatpush.bf16.msra.mxu0 0
    %176 = vmatpush.bf16.msra.mxu0 0
    %177 = vmatpush.bf16.msra.mxu0 0
    %178 = vmatpush.bf16.msra.mxu0 0
    %179 = vmatpush.bf16.msra.mxu0 0
    %180 = vmatpush.bf16.msra.mxu0 %v168
    %181 = vmatpush.bf16.msra.mxu0 %v167
    %182 = vmatmul.bf16.gmra.mxu0 %v172
    %v183 = vpop.f32.mrf.mxu0
    %v184 = vadd.f32 0.0, %v183
    %v185 = vpop.f32.mrf.mxu0
    %v186 = vadd.f32 0.0, %v185
    %187 = vdwg.mxu0
    %v188 = vld [vmem:[#allocation10] sm:$0xff]
    %v189 = vld [vmem:[#allocation10 + $0x8] sm:$0xff]
    %v190 = vsub.f32 %v188, %v184
    %v191 = vsub.f32 %v189, %v186
    %192 = vst.msk [vmem:[#allocation10] sm:$0xff] %vm145, %v190
    %193 = vst.msk [vmem:[#allocation10 + $0x8] sm:$0xff] %vm145, %v191
    %v194 = vld [vmem:[#allocation11] sm:$0xff]
    %v195 = vld [vmem:[#allocation11 + $0x8] sm:$0xff]
    %v196 = vsub.f32 %v194, %v184
    %v197 = vsub.f32 %v195, %v186
    %198 = vst.msk [vmem:[#allocation11] sm:$0xff] %vm145, %v196
    %199 = vst.msk [vmem:[#allocation11 + $0x8] sm:$0xff] %vm145, %v197
    %v200 = vunpack.c.l.bf16 %v94
    %v201 = vunpack.c.l.bf16 %v95
    %v202 = vunpack.c.l.bf16 %v96
    %v203 = vunpack.c.l.bf16 %v97
    %v204 = vadd.f32 %v200, %v202
    %v205 = vadd.f32 %v201, %v203
    %v206 = vpack.c.bf16 %v205, %v204
    %v207 = vunpack.c.l.bf16 %v98
    %v208 = vunpack.c.l.bf16 %v99
    %v209 = vunpack.c.l.bf16 %v100
    %v210 = vunpack.c.l.bf16 %v101
    %v211 = vunpack.c.l.bf16 %v102
    %v212 = vunpack.c.l.bf16 %v103
    %v213 = vunpack.c.l.bf16 %v104
    %v214 = vunpack.c.l.bf16 %v105
    %v215 = vadd.f32 %v207, %v211
    %v216 = vadd.f32 %v208, %v212
    %v217 = vadd.f32 %v209, %v213
    %v218 = vadd.f32 %v210, %v214
    %v219 = vpack.c.bf16 %v216, %v215
    %v220 = vpack.c.bf16 %v218, %v217
    %v222 = vsel %vm123, %v206, 0
    %224 = vmatpush.bf16.msra.mxu0 0
    %225 = vmatpush.bf16.msra.mxu0 0
    %226 = vmatpush.bf16.msra.mxu0 0
    %227 = vmatpush.bf16.msra.mxu0 0
    %228 = vmatpush.bf16.msra.mxu0 0
    %229 = vmatpush.bf16.msra.mxu0 0
    %230 = vmatpush.bf16.msra.mxu0 %v220
    %231 = vmatpush.bf16.msra.mxu0 %v219
    %232 = vmatmul.bf16.gmra.mxu0 %v222
    %v233 = vpop.f32.mrf.mxu0
    %v234 = vadd.f32 0.0, %v233
    %v235 = vpop.f32.mrf.mxu0
    %v236 = vadd.f32 0.0, %v235
    %237 = vdwg.mxu0
    %v238 = vld [vmem:[#allocation11] sm:$0xff]
    %v239 = vld [vmem:[#allocation11 + $0x8] sm:$0xff]
    %v240 = vadd.f32 %v238, %v234
    %v241 = vadd.f32 %v239, %v236
    %242 = vst.msk [vmem:[#allocation11] sm:$0xff] %vm145, %v240
    %243 = vst.msk [vmem:[#allocation11 + $0x8] sm:$0xff] %vm145, %v241
    // Predicated region
    $region38: #{tpu_custom_call.1} parent=1 // pred_check
      _
    $region39: #{tpu_custom_call.1} parent=1 // pred_check_branch
      %245 = sbr.rel (0) target = $region41
    $region40: #{tpu_custom_call.1} parent=1 // pred_region
      %247 = vsyncadd [#allocation4], 0
      %s248 = sshll.u32 [#allocation10], 4
      %s249 = int_to_ptr.vmem [resolvable:$true] %s248
      %s250 = sshll.u32 %s4, 4
      %s251 = int_to_ptr.hbm [resolvable:$true] %s250
      %256 = dma.vmem_to_hbm [thread:$0]  %s249, 256, %s251, [#allocation4], 128, 128, 8
    $region41: #{tpu_custom_call.1} parent=1 // pred_fallthru
      _
    // Predicated region
    $region42: #{tpu_custom_call.1} parent=1 // pred_check
      _
    $region43: #{tpu_custom_call.1} parent=1 // pred_check_branch
      %258 = sbr.rel (0) target = $region45
    $region44: #{tpu_custom_call.1} parent=1 // pred_region
      %260 = vsyncadd [#allocation12], 0
      %s261 = sshll.u32 [#allocation11], 4
      %s262 = int_to_ptr.vmem [resolvable:$true] %s261
      %s263 = sshll.u32 %s5, 4
      %s264 = int_to_ptr.hbm [resolvable:$true] %s263
      %269 = dma.vmem_to_hbm [thread:$0]  %s262, 256, %s264, [#allocation12], 128, 128, 8
    $region45: #{tpu_custom_call.1} parent=1 // pred_fallthru
      _
    // Predicated region
    $region46: #{tpu_custom_call.1} parent=1 // pred_check
      _
    $region47: #{tpu_custom_call.1} parent=1 // pred_check_branch
      %271 = sbr.rel (0) target = $region49
    $region48: #{tpu_custom_call.1} parent=1 // pred_region
      %273 = dma.done [#allocation4], 256
    $region49: #{tpu_custom_call.1} parent=1 // pred_fallthru
      _
    // Predicated region
    $region50: #{tpu_custom_call.1} parent=1 // pred_check
      _
    $region51: #{tpu_custom_call.1} parent=1 // pred_check_branch
      %275 = sbr.rel (0) target = $region53
    $region52: #{tpu_custom_call.1} parent=1 // pred_region
      %277 = dma.done [#allocation12], 256
    $region53: #{tpu_custom_call.1} parent=1 // pred_fallthru
      _
    %278 = vsyncpa [#allocation3], 1
    %279 = vsyncpa [#allocation6], 1
    %280 = vsyncpa [#allocation9], 1
    %281 = vsyncpa [#allocation4], 1
    %282 = vsyncpa [#allocation12], 1

</llo_original>
